<compile_context>
chip_gen: v7x
topology: tpu7x:2x2x1
jax: 0.10.0
libtpu: 0.0.40
codegen_flags: <defaults>
</compile_context>

<pallas_src>
import functools

import jax
import jax.numpy as jnp
import numpy as np
from jax import lax
from jax.experimental import pallas as pl
from jax.experimental.pallas import tpu as pltpu


def _input_repr_kernel(*refs, eps, has_bias):
    """One (seq_tile, D_in) row tile per grid step: fused Linear + pos add + LayerNorm."""
    if has_bias:
        x_ref, pos_ref, w_ref, b_ref, gamma_ref, beta_ref, out_ref = refs
    else:
        # Linear bias already folded into the positional table on the host.
        x_ref, pos_ref, w_ref, gamma_ref, beta_ref, out_ref = refs
        b_ref = None

    x = x_ref[...].astype(jnp.float32)          # (ts, D_in)
    w = w_ref[...].astype(jnp.float32)          # (D_in, H)

    # spec_transform (MXU) + positional encodings (+ bias)
    y = jnp.dot(x, w, preferred_element_type=jnp.float32) + pos_ref[...]
    if has_bias:
        y = y + b_ref[...]

    # LayerNorm over the hidden dimension (f32; rsqrt -> EUP)
    mean = jnp.mean(y, axis=-1, keepdims=True)
    var = jnp.mean(jnp.square(y - mean), axis=-1, keepdims=True)
    norm = (y - mean) * lax.rsqrt(var + eps)

    # Dropout is identity in eval mode.
    # TODO(synk): training-mode dropout (stochastic masking via pltpu.prng_*) not implemented.
    out_ref[...] = (norm * gamma_ref[...] + beta_ref[...]).astype(out_ref.dtype)


def _cdiv(a, b):
    return (a + b - 1) // b


def m3bert_input_representations(spec, pos_enc, params, *, eps=1e-12, row_tile=1024):
    """spec: (B, S, D_in) f32; pos_enc: (S, H) shared table or (B, S, H); params: w/b/gamma/beta."""
    B, S, D = spec.shape
    H = params["w"].shape[1]

    w = params["w"]
    b = params["b"].reshape(1, H)
    gamma = params["gamma"].reshape(1, H)
    beta = params["beta"].reshape(1, H)

    pos_is_2d = (pos_enc.ndim == 2)

    # ---- seq-tile selection: this op is HBM-bound, so take the biggest tile that fits a
    # conservative double-buffered VMEM budget (safe on v7x 32 MiB scoped / 64 MiB physical). ----
    itemsize = 4  # f32
    per_row_db = 2 * (D + 2 * H) * itemsize            # spec + pos + out rows, double-buffered
    resident = 2 * (D * H + 4 * H) * itemsize          # W + b/gamma/beta (double-buffered)
    budget = 28 << 20
    max_ts = max(8, (budget - resident) // per_row_db)
    ts = int(min(S, row_tile, max_ts))
    if ts < S:
        ts = max(8, (ts // 8) * 8)                     # sublane (8) alignment when not full-S

    # v7x megacore: guarantee >= 2 grid steps when there is enough work to split.
    if B * _cdiv(S, ts) < 2 and S >= 16:
        ts = max(8, ((_cdiv(S, 2) + 7) // 8) * 8)

    n_s = _cdiv(S, ts)
    grid = (B, n_s)

    const2 = lambda bb, ss: (0, 0)

    in_specs = [pl.BlockSpec((pl.Squeezed(), ts, D), lambda bb, ss: (bb, ss, 0))]  # spectrogram
    inputs = [spec]

    if pos_is_2d:
        # Shared (S, H) positional table: fold the Linear bias into it ONCE on the host and
        # index it directly -> no (B, S, H) broadcast is ever materialized in HBM.
        pos_table = (pos_enc + b).astype(jnp.float32)
        in_specs.append(pl.BlockSpec((ts, H), lambda bb, ss: (ss, 0)))
        inputs.append(pos_table)
    else:
        in_specs.append(pl.BlockSpec((pl.Squeezed(), ts, H), lambda bb, ss: (bb, ss, 0)))
        inputs.append(pos_enc)

    in_specs.append(pl.BlockSpec((D, H), const2))       # spec_transform weight (resident)
    inputs.append(w)
    if not pos_is_2d:
        in_specs.append(pl.BlockSpec((1, H), const2))   # spec_transform bias
        inputs.append(b)
    in_specs.append(pl.BlockSpec((1, H), const2))       # LayerNorm gamma
    inputs.append(gamma)
    in_specs.append(pl.BlockSpec((1, H), const2))       # LayerNorm beta
    inputs.append(beta)

    # Explicit scoped-VMEM limit so large tiles also compile on v5e (16 MiB default).
    vmem_need = 2 * ts * (D + 2 * H) * itemsize + resident + (2 << 20)
    vmem_limit = int(min(48 << 20, max(32 << 20, vmem_need)))

    kernel = functools.partial(_input_repr_kernel, eps=eps, has_bias=not pos_is_2d)

    out = pl.pallas_call(
        kernel,
        out_shape=jax.ShapeDtypeStruct((B, S, H), spec.dtype),
        grid_spec=pltpu.PrefetchScalarGridSpec(
            num_scalar_prefetch=0,
            grid=grid,
            in_specs=in_specs,
            out_specs=pl.BlockSpec((pl.Squeezed(), ts, H), lambda bb, ss: (bb, ss, 0)),
        ),
        compiler_params=pltpu.CompilerParams(
            dimension_semantics=("parallel", "parallel"),
            vmem_limit_bytes=vmem_limit,
        ),
    )(*inputs)
    return out


def _reference(spec, pos_enc, params, eps=1e-12):
    """Pure-JAX reference reproducing the PyTorch forward (eval mode)."""
    H = params["w"].shape[1]
    pos = pos_enc if pos_enc.ndim == 3 else pos_enc[None, :, :]
    y = spec @ params["w"] + params["b"].reshape(1, 1, H) + pos
    mean = jnp.mean(y, axis=-1, keepdims=True)
    var = jnp.mean(jnp.square(y - mean), axis=-1, keepdims=True)
    return ((y - mean) / jnp.sqrt(var + eps)) * params["gamma"].reshape(1, 1, H) \
        + params["beta"].reshape(1, 1, H)


if __name__ == "__main__":
    # Small config consistent with the module:
    #   input_dim=40, downsample_rate=2 -> D_in = 80, hidden_size=32, batch=2, seq=8.
    B, S, INPUT_DIM, DOWNSAMPLE, H = 2, 8, 40, 2, 32
    D = INPUT_DIM * DOWNSAMPLE
    EPS = 1e-12

    key = jax.random.PRNGKey(0)
    ks = jax.random.split(key, 5)
    init = lambda k, shape, scale=0.05: (scale * jax.random.normal(k, shape)).astype(jnp.float32)

    params = {
        "w": init(ks[0], (D, H)),               # (in, out) layout -> x @ W + b
        "b": init(ks[1], (1, H)),
        "gamma": jnp.ones((1, H), jnp.float32),
        "beta": jnp.zeros((1, H), jnp.float32),
    }

    spec = jax.random.normal(ks[2], (B, S, D), dtype=jnp.float32)
    pos_table = 0.1 * jax.random.normal(ks[3], (S, H), dtype=jnp.float32)       # shared table
    pos_batched = 0.1 * jax.random.normal(ks[4], (B, S, H), dtype=jnp.float32)  # per-batch pos

    # Shared-(S,H)-table path (bias folded into the table, no broadcast materialized).
    out_a = jax.block_until_ready(m3bert_input_representations(spec, pos_table, params, eps=EPS))
    # Per-batch (B,S,H) path (bias added in-kernel).
    out_b = jax.block_until_ready(m3bert_input_representations(spec, pos_batched, params, eps=EPS))

    ref_a = _reference(spec, pos_table, params, eps=EPS)
    ref_b = _reference(spec, pos_batched, params, eps=EPS)
    np.testing.assert_allclose(np.asarray(out_a), np.asarray(ref_a), rtol=1e-5, atol=1e-5)
    np.testing.assert_allclose(np.asarray(out_b), np.asarray(ref_b), rtol=1e-5, atol=1e-5)

    print("KERNEL_OK")
</pallas_src>

<mosaic_0001>
module attributes {stable_mosaic.version = 11 : i64} {
  func.func @_input_repr_kernel(%arg0: i32, %arg1: i32, %arg2: memref<1x8x80xf32, #tpu.memory_space<vmem>>, %arg3: memref<8x32xf32, #tpu.memory_space<vmem>>, %arg4: memref<80x32xf32, #tpu.memory_space<vmem>>, %arg5: memref<1x32xf32, #tpu.memory_space<vmem>>, %arg6: memref<1x32xf32, #tpu.memory_space<vmem>>, %arg7: memref<1x8x32xf32, #tpu.memory_space<vmem>>) attributes {dimension_semantics = [#tpu.dimension_semantics<parallel>, #tpu.dimension_semantics<parallel>], iteration_bounds = array<i64: 2, 1>, scalar_prefetch = 0 : i64, scratch_operands = 0 : i64, tpu.core_type = #tpu.core_type<tc>, window_params = [{transform_indices = @transform_0, window_bounds = array<i64: 1, 8, 80>}, {transform_indices = @transform_1, window_bounds = array<i64: 8, 32>}, {pipeline_mode = #tpu.pipeline_mode<synchronous>, transform_indices = @transform_2, window_bounds = array<i64: 80, 32>}, {pipeline_mode = #tpu.pipeline_mode<synchronous>, transform_indices = @transform_3, window_bounds = array<i64: 1, 32>}, {pipeline_mode = #tpu.pipeline_mode<synchronous>, transform_indices = @transform_4, window_bounds = array<i64: 1, 32>}, {transform_indices = @transform_5, window_bounds = array<i64: 1, 8, 32>}]} {
    %c0 = arith.constant 0 : index
    %c0_0 = arith.constant 0 : index
    %c0_1 = arith.constant 0 : index
    %0 = vector.load %arg2[%c0, %c0_0, %c0_1] : memref<1x8x80xf32, #tpu.memory_space<vmem>>, vector<1x8x80xf32>
    %1 = vector.shape_cast %0 : vector<1x8x80xf32> to vector<8x80xf32>
    %c0_2 = arith.constant 0 : index
    %c0_3 = arith.constant 0 : index
    %2 = vector.load %arg4[%c0_2, %c0_3] : memref<80x32xf32, #tpu.memory_space<vmem>>, vector<80x32xf32>
    %cst = arith.constant dense<0.000000e+00> : vector<8x32xf32>
    %3 = tpu.matmul %1, %2, %cst {dimension_numbers = #tpu.dot_dimension_numbers<[1], [0], [0], [1], [0, 0, 1, 1], [], []>} : vector<8x80xf32>, vector<80x32xf32>, vector<8x32xf32> -> vector<8x32xf32>
    %c0_4 = arith.constant 0 : index
    %c0_5 = arith.constant 0 : index
    %4 = vector.load %arg3[%c0_4, %c0_5] : memref<8x32xf32, #tpu.memory_space<vmem>>, vector<8x32xf32>
    %5 = arith.addf %3, %4 : vector<8x32xf32>
    %cst_6 = arith.constant dense<0.000000e+00> : vector<8xf32>
    %6 = vector.multi_reduction <add>, %5, %cst_6 [1] : vector<8x32xf32> to vector<8xf32>
    %7 = vector.shape_cast %6 : vector<8xf32> to vector<8x1xf32>
    %cst_7 = arith.constant 3.200000e+01 : f32
    %8 = vector.broadcast %cst_7 : f32 to vector<8x1xf32>
    %9 = arith.divf %7, %8 : vector<8x1xf32>
    %10 = vector.broadcast %9 : vector<8x1xf32> to vector<8x32xf32>
    %11 = arith.subf %5, %10 : vector<8x32xf32>
    %12 = arith.mulf %11, %11 : vector<8x32xf32>
    %cst_8 = arith.constant dense<0.000000e+00> : vector<8xf32>
    %13 = vector.multi_reduction <add>, %12, %cst_8 [1] : vector<8x32xf32> to vector<8xf32>
    %14 = vector.shape_cast %13 : vector<8xf32> to vector<8x1xf32>
    %cst_9 = arith.constant 3.200000e+01 : f32
    %15 = vector.broadcast %cst_9 : f32 to vector<8x1xf32>
    %16 = arith.divf %14, %15 : vector<8x1xf32>
    %17 = vector.broadcast %9 : vector<8x1xf32> to vector<8x32xf32>
    %18 = arith.subf %5, %17 : vector<8x32xf32>
    %cst_10 = arith.constant 9.99999996E-13 : f32
    %19 = vector.broadcast %cst_10 : f32 to vector<8x1xf32>
    %20 = arith.addf %16, %19 : vector<8x1xf32>
    %21 = math.rsqrt %20 : vector<8x1xf32>
    %22 = vector.broadcast %21 : vector<8x1xf32> to vector<8x32xf32>
    %23 = arith.mulf %18, %22 : vector<8x32xf32>
    %c0_11 = arith.constant 0 : index
    %c0_12 = arith.constant 0 : index
    %24 = vector.load %arg5[%c0_11, %c0_12] : memref<1x32xf32, #tpu.memory_space<vmem>>, vector<1x32xf32>
    %25 = vector.broadcast %24 : vector<1x32xf32> to vector<8x32xf32>
    %26 = arith.mulf %23, %25 : vector<8x32xf32>
    %c0_13 = arith.constant 0 : index
    %c0_14 = arith.constant 0 : index
    %27 = vector.load %arg6[%c0_13, %c0_14] : memref<1x32xf32, #tpu.memory_space<vmem>>, vector<1x32xf32>
    %28 = vector.broadcast %27 : vector<1x32xf32> to vector<8x32xf32>
    %29 = arith.addf %26, %28 : vector<8x32xf32>
    %c0_15 = arith.constant 0 : index
    %c0_16 = arith.constant 0 : index
    %c0_17 = arith.constant 0 : index
    %30 = vector.load %arg7[%c0_15, %c0_16, %c0_17] : memref<1x8x32xf32, #tpu.memory_space<vmem>>, vector<1x8x32xf32>
    %31 = vector.shape_cast %30 : vector<1x8x32xf32> to vector<8x32xf32>
    %32 = vector.shape_cast %29 : vector<8x32xf32> to vector<1x8x32xf32>
    tpu.vector_store %arg7[%c0_15, %c0_16, %c0_17], %32 {strides = array<i32>} : memref<1x8x32xf32, #tpu.memory_space<vmem>>, vector<1x8x32xf32>,
    return
  }
  func.func @transform_0(%arg0: i32, %arg1: i32) -> (i32, i32, i32) {
    %c0_i32 = arith.constant 0 : i32
    %c0_i32_0 = arith.constant 0 : i32
    return %arg0, %arg1, %c0_i32 : i32, i32, i32
  }
  func.func @transform_1(%arg0: i32, %arg1: i32) -> (i32, i32) {
    %c0_i32 = arith.constant 0 : i32
    %c0_i32_0 = arith.constant 0 : i32
    return %arg1, %c0_i32 : i32, i32
  }
  func.func @transform_2(%arg0: i32, %arg1: i32) -> (i32, i32) {
    %c0_i32 = arith.constant 0 : i32
    %c0_i32_0 = arith.constant 0 : i32
    %c0_i32_1 = arith.constant 0 : i32
    return %c0_i32, %c0_i32_0 : i32, i32
  }
  func.func @transform_3(%arg0: i32, %arg1: i32) -> (i32, i32) {
    %c0_i32 = arith.constant 0 : i32
    %c0_i32_0 = arith.constant 0 : i32
    %c0_i32_1 = arith.constant 0 : i32
    return %c0_i32, %c0_i32_0 : i32, i32
  }
  func.func @transform_4(%arg0: i32, %arg1: i32) -> (i32, i32) {
    %c0_i32 = arith.constant 0 : i32
    %c0_i32_0 = arith.constant 0 : i32
    %c0_i32_1 = arith.constant 0 : i32
    return %c0_i32, %c0_i32_0 : i32, i32
  }
  func.func @transform_5(%arg0: i32, %arg1: i32) -> (i32, i32, i32) {
    %c0_i32 = arith.constant 0 : i32
    %c0_i32_0 = arith.constant 0 : i32
    return %arg0, %arg1, %c0_i32 : i32, i32, i32
  }
}

</mosaic_0001>

<llo_original>
// kernel: tpu_custom_call.1
$region0: #{tpu_custom_call.1}
  #allocation0 [shape = 'u32[]', space=smem, size = 0x4, offset = 0x4, fixed_abs, tag = 'smem constant byte address 0x4 - core index']
  #allocation1 [shape = 'u32[144,128]{1,0:T(1,128)}', space=vmem, size = 0x12000, scoped, tag = 'internal scratch']
  %s0 = inlined_call_operand.vmem [shape: f32[2,8,80], index: 0, kind: input, shape index: {}]
  %s1 = inlined_call_operand.vmem [shape: f32[8,32], index: 1, kind: input, shape index: {}]
  %s2 = inlined_call_operand.vmem [shape: f32[80,32], index: 2, kind: input, shape index: {}]
  %s3 = inlined_call_operand.vmem [shape: f32[1,32], index: 3, kind: input, shape index: {}]
  %s4 = inlined_call_operand.vmem [shape: f32[1,32], index: 4, kind: input, shape index: {}]
  %s5 = inlined_call_operand.hbm [shape: f32[2,8,32], index: 5, kind: output, shape index: {}]
  %s6 = sld [smem:[#allocation0]]
  $region53: #{tpu_custom_call.1} parent=0
    _
  %s8 = ssub.s32 1, %s6
  %s9 = scalar_select 0, %s8, %s6
  $region1: #{tpu_custom_call.1} parent=0
    #allocation2 [shape = 'u8[8192]{0}', space=vmem, size = 0x2000, scoped, tag = 'output window, operand 0']
    #allocation3 [shape = 's32[2]{0}', space=sflag, size = 0x8, scoped, tag = 'scoped memory for tpu_custom_call.1']
    %10 = vsyncpa [#allocation3], 0
    %s11 = scalar_lea.sflag [#allocation3], 1
    %12 = vsyncpa %s11, 0
    loop: start=0, step=1, limit=4
    $region2: #{tpu_custom_call.1} parent=1 // loop_pre_header
      _
    $region3: #{tpu_custom_call.1} parent=1 // loop_header
      %s14 = sphi 0, %s18
      %p15 = scmp.ge.s32.totalorder %s14, 4
      %s21 = sphi 0, %s33
      %s22 = sphi 0, %s29
      %s23 = sphi 0, %s21
      %s24 = sphi 0, %s22
      %s25 = sphi 0, %s23
      %s26 = sphi 0, %s24
      %s38 = sphi 0, %s40
      %s41 = sphi 0, %s38
      %s42 = sphi 0, %s41
      %s58 = sphi 0, %s42
      %s64 = sphi 0, %s66
      %s67 = sphi 0, %s64
      %s68 = sphi 0, %s67
      %s84 = sphi 0, %s68
      %s88 = sphi 0, %s88
      %s90 = sphi 0, %s88
      %s91 = sphi 0, %s90
      %s105 = sphi 0, %s91
      %s109 = sphi 0, %s109
      %s111 = sphi 0, %s109
      %s112 = sphi 0, %s111
      %s126 = sphi 0, %s112
      %s130 = sphi 0, %s130
      %s132 = sphi 0, %s130
      %s133 = sphi 0, %s132
      %s147 = sphi 0, %s133
      %s155 = sphi 0, %s157
      %s158 = sphi 0, %s155
      %s159 = sphi 0, %s158
      %s175 = sphi 0, %s159
    $region4: #{tpu_custom_call.1} parent=1 // loop_header_branch
      %17 = sbr.rel (%p15) target = $region8
    $region5: #{tpu_custom_call.1} parent=1 // loop_body
      %s19 = ssub.s32 %s14, 1
      %s20 = ssub.s32 %s14, 2
      %s27 = sadd.s32 1, %s22
      %p28 = scmp.ge.s32.totalorder %s27, 1
      %s29 = scalar_select %p28, 0, %s27
      %s30 = sadd.s32 1, %s21
      %s31 = scalar_select %p28, %s30, %s21
      %p32 = scmp.ge.s32.totalorder %s31, 2
      %s33 = scalar_select %p32, 0, %s31
      %s34 = ssub.s32 %s21, %s33
      %s35 = ssub.s32 %s22, %s29
      %s36 = sor.u32 %s34, %s35
      %p37 = scmp.eq.s32.totalorder %s36, 0
      %s39 = sadd.s32 %s38, 1
      %s40 = scalar_select %p37, %s38, %s39
      %p43 = pneg %p37
      %p44 = scmp.eq.s32.totalorder %s14, 1
      %p45 = por %p43, %p44
      %p46 = scmp.ne.s32.totalorder %s38, %s41
      %p47 = scmp.eq.s32.totalorder %s14, 0
      %p48 = por %p46, %p47
      %p49 = scmp.ne.s32.totalorder %s38, %s41
      %p50 = scmp.eq.s32.totalorder %s19, 1
      %p51 = por %p49, %p50
      %p52 = scmp.ne.s32.totalorder %s41, %s42
      %p53 = scmp.eq.s32.totalorder %s19, 0
      %p54 = por %p52, %p53
      %p55 = scmp.ne.s32.totalorder %s41, %s42
      %p56 = scmp.eq.s32.totalorder %s20, 1
      %p57 = por %p55, %p56
      %p59 = scmp.ne.s32.totalorder %s42, %s58
      %p60 = scmp.eq.s32.totalorder %s20, 0
      %p61 = por %p59, %p60
      %s62 = ssub.s32 %s22, %s29
      %p63 = scmp.eq.s32.totalorder %s62, 0
      %s65 = sadd.s32 %s64, 1
      %s66 = scalar_select %p63, %s64, %s65
      %p69 = pneg %p63
      %p70 = scmp.eq.s32.totalorder %s14, 1
      %p71 = por %p69, %p70
      %p72 = scmp.ne.s32.totalorder %s64, %s67
      %p73 = scmp.eq.s32.totalorder %s14, 0
      %p74 = por %p72, %p73
      %p75 = scmp.ne.s32.totalorder %s64, %s67
      %p76 = scmp.eq.s32.totalorder %s19, 1
      %p77 = por %p75, %p76
      %p78 = scmp.ne.s32.totalorder %s67, %s68
      %p79 = scmp.eq.s32.totalorder %s19, 0
      %p80 = por %p78, %p79
      %p81 = scmp.ne.s32.totalorder %s67, %s68
      %p82 = scmp.eq.s32.totalorder %s20, 1
      %p83 = por %p81, %p82
      %p85 = scmp.ne.s32.totalorder %s68, %s84
      %p86 = scmp.eq.s32.totalorder %s20, 0
      %p87 = por %p85, %p86
      %s89 = sadd.s32 %s88, 1
      %p92 = scmp.eq.s32.totalorder %s14, 1
      %p93 = scmp.ne.s32.totalorder %s88, %s90
      %p94 = scmp.eq.s32.totalorder %s14, 0
      %p95 = por %p93, %p94
      %p96 = scmp.ne.s32.totalorder %s88, %s90
      %p97 = scmp.eq.s32.totalorder %s19, 1
      %p98 = por %p96, %p97
      %p99 = scmp.ne.s32.totalorder %s90, %s91
      %p100 = scmp.eq.s32.totalorder %s19, 0
      %p101 = por %p99, %p100
      %p102 = scmp.ne.s32.totalorder %s90, %s91
      %p103 = scmp.eq.s32.totalorder %s20, 1
      %p104 = por %p102, %p103
      %p106 = scmp.ne.s32.totalorder %s91, %s105
      %p107 = scmp.eq.s32.totalorder %s20, 0
      %p108 = por %p106, %p107
      %s110 = sadd.s32 %s109, 1
      %p113 = scmp.eq.s32.totalorder %s14, 1
      %p114 = scmp.ne.s32.totalorder %s109, %s111
      %p115 = scmp.eq.s32.totalorder %s14, 0
      %p116 = por %p114, %p115
      %p117 = scmp.ne.s32.totalorder %s109, %s111
      %p118 = scmp.eq.s32.totalorder %s19, 1
      %p119 = por %p117, %p118
      %p120 = scmp.ne.s32.totalorder %s111, %s112
      %p121 = scmp.eq.s32.totalorder %s19, 0
      %p122 = por %p120, %p121
      %p123 = scmp.ne.s32.totalorder %s111, %s112
      %p124 = scmp.eq.s32.totalorder %s20, 1
      %p125 = por %p123, %p124
      %p127 = scmp.ne.s32.totalorder %s112, %s126
      %p128 = scmp.eq.s32.totalorder %s20, 0
      %p129 = por %p127, %p128
      %s131 = sadd.s32 %s130, 1
      %p134 = scmp.eq.s32.totalorder %s14, 1
      %p135 = scmp.ne.s32.totalorder %s130, %s132
      %p136 = scmp.eq.s32.totalorder %s14, 0
      %p137 = por %p135, %p136
      %p138 = scmp.ne.s32.totalorder %s130, %s132
      %p139 = scmp.eq.s32.totalorder %s19, 1
      %p140 = por %p138, %p139
      %p141 = scmp.ne.s32.totalorder %s132, %s133
      %p142 = scmp.eq.s32.totalorder %s19, 0
      %p143 = por %p141, %p142
      %p144 = scmp.ne.s32.totalorder %s132, %s133
      %p145 = scmp.eq.s32.totalorder %s20, 1
      %p146 = por %p144, %p145
      %p148 = scmp.ne.s32.totalorder %s133, %s147
      %p149 = scmp.eq.s32.totalorder %s20, 0
      %p150 = por %p148, %p149
      %s151 = ssub.s32 %s21, %s33
      %s152 = ssub.s32 %s22, %s29
      %s153 = sor.u32 %s151, %s152
      %p154 = scmp.eq.s32.totalorder %s153, 0
      %s156 = sadd.s32 %s155, 1
      %s157 = scalar_select %p154, %s155, %s156
      %p160 = pneg %p154
      %p161 = scmp.eq.s32.totalorder %s14, 1
      %p162 = por %p160, %p161
      %p163 = scmp.ne.s32.totalorder %s155, %s158
      %p164 = scmp.eq.s32.totalorder %s14, 0
      %p165 = por %p163, %p164
      %p166 = scmp.ne.s32.totalorder %s155, %s158
      %p167 = scmp.eq.s32.totalorder %s19, 1
      %p168 = por %p166, %p167
      %p169 = scmp.ne.s32.totalorder %s158, %s159
      %p170 = scmp.eq.s32.totalorder %s19, 0
      %p171 = por %p169, %p170
      %p172 = scmp.ne.s32.totalorder %s158, %s159
      %p173 = scmp.eq.s32.totalorder %s20, 1
      %p174 = por %p172, %p173
      %p176 = scmp.ne.s32.totalorder %s159, %s175
      %p177 = scmp.eq.s32.totalorder %s20, 0
      %p178 = por %p176, %p177
      %p179 = scmp.le.s32.totalorder 1, %s14
      %p180 = scmp.lt.s32.totalorder %s14, 3
      %p181 = pnand %p179, %p180
      %p182 = pneg %p181
      // Predicated region
      $region9: #{tpu_custom_call.1} parent=5 // pred_check
        _
      $region10: #{tpu_custom_call.1} parent=5 // pred_check_branch
        %184 = sbr.rel (%p181) target = $region12
      $region11: #{tpu_custom_call.1} parent=5 // pred_region
        %s185 = ssub.s32 %s14, 1
        // Predicated region
        $region13: #{tpu_custom_call.1} parent=11 // pred_check
          %p186 = pneg %p80
        $region14: #{tpu_custom_call.1} parent=11 // pred_check_branch
          %188 = sbr.rel (%p186) target = $region16
        $region15: #{tpu_custom_call.1} parent=11 // pred_region
          %p189 = scmp.lt.s32.totalorder %s24, 0
          %s190 = scalar_select %p189, %s24, 0
          %s191 = smul.addr %s190, 8
          %s192 = scalar_lea.vmem %s1, %s191
        $region16: #{tpu_custom_call.1} parent=11 // pred_fallthru
          _
        // Predicated region
        $region17: #{tpu_custom_call.1} parent=11 // pred_check
          %p193 = pneg %p101
        $region18: #{tpu_custom_call.1} parent=11 // pred_check_branch
          %195 = sbr.rel (%p193) target = $region20
        $region19: #{tpu_custom_call.1} parent=11 // pred_region
          _
        $region20: #{tpu_custom_call.1} parent=11 // pred_fallthru
          _
        // Predicated region
        $region21: #{tpu_custom_call.1} parent=11 // pred_check
          %p196 = pneg %p122
        $region22: #{tpu_custom_call.1} parent=11 // pred_check_branch
          %198 = sbr.rel (%p196) target = $region24
        $region23: #{tpu_custom_call.1} parent=11 // pred_region
          _
        $region24: #{tpu_custom_call.1} parent=11 // pred_fallthru
          _
        // Predicated region
        $region25: #{tpu_custom_call.1} parent=11 // pred_check
          %p199 = pneg %p143
        $region26: #{tpu_custom_call.1} parent=11 // pred_check_branch
          %201 = sbr.rel (%p199) target = $region28
        $region27: #{tpu_custom_call.1} parent=11 // pred_region
          _
        $region28: #{tpu_custom_call.1} parent=11 // pred_fallthru
          _
      $region12: #{tpu_custom_call.1} parent=5 // pred_fallthru
        _
      %p202 = scmp.lt.s32.totalorder %s14, 2
      // Predicated region
      $region29: #{tpu_custom_call.1} parent=5 // pred_check
        %p203 = pneg %p202
      $region30: #{tpu_custom_call.1} parent=5 // pred_check_branch
        %205 = sbr.rel (%p203) target = $region32
      $region31: #{tpu_custom_call.1} parent=5 // pred_region
        // Predicated region
        $region33: #{tpu_custom_call.1} parent=31 // pred_check
          %p206 = pneg %p48
        $region34: #{tpu_custom_call.1} parent=31 // pred_check_branch
          %208 = sbr.rel (%p206) target = $region36
        $region35: #{tpu_custom_call.1} parent=31 // pred_region
          %p209 = scmp.lt.s32.totalorder %s21, 1
          %s210 = scalar_select %p209, %s21, 1
          %p211 = scmp.lt.s32.totalorder %s22, 0
          %s212 = scalar_select %p211, %s22, 0
          %s213 = sadd.s32 %s212, %s210
          %s214 = smul.addr %s213, 8
          %s215 = scalar_lea.vmem %s0, %s214
        $region36: #{tpu_custom_call.1} parent=31 // pred_fallthru
          _
      $region32: #{tpu_custom_call.1} parent=5 // pred_fallthru
        _
      %p216 = scmp.le.s32.totalorder 1, %s14
      %p217 = scmp.lt.s32.totalorder %s14, 3
      %p218 = pnand %p216, %p217
      %p219 = pneg %p218
      // Predicated region
      $region37: #{tpu_custom_call.1} parent=5 // pred_check
        _
      $region38: #{tpu_custom_call.1} parent=5 // pred_check_branch
        %221 = sbr.rel (%p218) target = $region40
      $region39: #{tpu_custom_call.1} parent=5 // pred_region
        %s222 = ssub.s32 %s14, 1
        %p223 = scmp.lt.s32.totalorder %s23, 1
        %s224 = scalar_select %p223, %s23, 1
        %p225 = scmp.lt.s32.totalorder %s24, 0
        %s226 = scalar_select %p225, %s24, 0
        %s227 = sadd.s32 %s226, %s224
        %s228 = smul.addr %s227, 8
        %s229 = scalar_lea.vmem %s0, %s228
        %p230 = pneg %p54
        %p231 = pneg %p51
        %p232 = scmp.lt.s32.totalorder %s24, 0
        %s233 = scalar_select %p232, %s24, 0
        %s234 = smul.addr %s233, 8
        %s235 = scalar_lea.vmem %s1, %s234
        %p236 = pneg %p80
        %p237 = pneg %p77
        %p238 = pneg %p101
        %p239 = pneg %p98
        %p240 = pneg %p122
        %p241 = pneg %p119
        %p242 = pneg %p143
        %p243 = pneg %p140
        %p244 = pneg %p171
        %p245 = pneg %p168
        %s246 = sand.u32 %s158, 1
        %s247 = scalar_lea.sflag [#allocation3], %s246
        %s248 = sand.u32 %s158, 1
        %s249 = smul.addr %s248, 8
        %s250 = scalar_lea.vmem [#allocation2], %s249
        %p251 = scmp.lt.s32.totalorder %s23, 1
        %s252 = scalar_select %p251, %s23, 1
        %p253 = scmp.lt.s32.totalorder %s24, 0
        %s254 = scalar_select %p253, %s24, 0
        %s255 = sadd.s32 %s254, %s252
        %s256 = smul.addr %s255, 8
        %s257 = scalar_lea.vmem %s0, %s256
        %p258 = scmp.lt.s32.totalorder %s24, 0
        %s259 = scalar_select %p258, %s24, 0
        %s260 = smul.addr %s259, 8
        %s261 = scalar_lea.vmem %s1, %s260
        %v262 = vld [vmem:[%s257] sm:$0xff]
        %v263 = vld [vmem:[%s2] sm:$0xff]
        %v264 = vld [vmem:[%s2 + $0x8] sm:$0xff]
        %v265 = vld [vmem:[%s2 + $0x10] sm:$0xff]
        %v266 = vld [vmem:[%s2 + $0x18] sm:$0xff]
        %v267 = vld [vmem:[%s2 + $0x20] sm:$0xff]
        %v268 = vld [vmem:[%s2 + $0x28] sm:$0xff]
        %v269 = vld [vmem:[%s2 + $0x30] sm:$0xff]
        %v270 = vld [vmem:[%s2 + $0x38] sm:$0xff]
        %v271 = vld [vmem:[%s2 + $0x40] sm:$0xff]
        %v272 = vld [vmem:[%s2 + $0x48] sm:$0xff]
        %v273 = vld [vmem:[%s261] sm:$0xff]
        %vm274 = vcmask 654336
        %v276 = vsel %vm274, %v262, 0
        %278 = vmatprep.subr.mxu0 0.0
        %279 = vmatpush1.msra.mxu0 %v263
        %280 = vmatprep.subr.mxu0 0.0
        %281 = vmatpush1.msra.mxu0 %v264
        %282 = vmatprep.subr.mxu0 0.0
        %283 = vmatpush1.msra.mxu0 %v265
        %284 = vmatprep.subr.mxu0 0.0
        %285 = vmatpush1.msra.mxu0 %v266
        %286 = vmatprep.subr.mxu0 0.0
        %287 = vmatpush1.msra.mxu0 %v267
        %288 = vmatprep.subr.mxu0 0.0
        %289 = vmatpush1.msra.mxu0 %v268
        %290 = vmatprep.subr.mxu0 0.0
        %291 = vmatpush1.msra.mxu0 %v269
        %292 = vmatprep.subr.mxu0 0.0
        %293 = vmatpush1.msra.mxu0 %v270
        %294 = vmatprep.subr.mxu0 0.0
        %295 = vmatpush1.msra.mxu0 %v271
        %296 = vmatprep.subr.mxu0 0.0
        %297 = vmatpush1.msra.mxu0 %v272
        %298 = vmatprep.subr.mxu0 0.0
        %299 = vmatpush1.msra.mxu0 0.0
        %300 = vmatprep.subr.mxu0 0.0
        %301 = vmatpush1.msra.mxu0 0.0
        %302 = vmatprep.subr.mxu0 0.0
        %303 = vmatpush1.msra.mxu0 0.0
        %304 = vmatprep.subr.mxu0 0.0
        %305 = vmatpush1.msra.mxu0 0.0
        %306 = vmatprep.subr.mxu0 0.0
        %307 = vmatpush1.msra.mxu0 0.0
        %308 = vmatprep.subr.mxu0 0.0
        %309 = vmatpush1.msra.mxu0 0.0
        %310 = vmatprep.subr.mxu0 0.0
        %311 = vmatpush1.msra.mxu0 0.0
        %312 = vmatprep.subr.mxu0 0.0
        %313 = vmatpush1.msra.mxu0 0.0
        %314 = vmatprep.subr.mxu0 0.0
        %315 = vmatpush1.msra.mxu0 0.0
        %316 = vmatprep.subr.mxu0 0.0
        %317 = vmatpush1.msra.mxu0 0.0
        %318 = vmatprep.subr.mxu0 0.0
        %319 = vmatpush1.msra.mxu0 0.0
        %320 = vmatprep.subr.mxu0 0.0
        %321 = vmatpush1.msra.mxu0 0.0
        %322 = vmatprep.subr.mxu0 0.0
        %323 = vmatpush1.msra.mxu0 0.0
        %324 = vmatprep.subr.mxu0 0.0
        %325 = vmatpush1.msra.mxu0 0.0
        %326 = vmatprep.subr.mxu0 0.0
        %327 = vmatpush1.msra.mxu0 0.0
        %328 = vmatprep.subr.mxu0 0.0
        %329 = vmatpush1.msra.mxu0 0.0
        %330 = vmatprep.subr.mxu0 0.0
        %331 = vmatpush1.msra.mxu0 0.0
        %332 = vmatprep.subr.mxu0 0.0
        %333 = vmatpush1.msra.mxu0 0.0
        %334 = vmatprep.subr.mxu0 0.0
        %335 = vmatpush1.msra.mxu0 0.0
        %336 = vmatprep.subr.mxu0 0.0
        %337 = vmatpush1.msra.mxu0 0.0
        %338 = vmatprep.subr.mxu0 0.0
        %339 = vmatpush1.msra.mxu0 0.0
        %340 = vmatprep.subr.mxu0 0.0
        %341 = vmatpush1.msra.mxu0 0.0
        %342 = vmatprep.mubr.f32.mxu0 0.0
        %343 = vmatmul.mubr.f32.gmra.mrb[0].mxu0 %v276
        %v344 = vpop.f32.mrb[0].mxu0
        %v345 = vadd.f32 %v273, %v344
        %v346 = vpop.f32.mrb[0].mxu0
        %347 = vdwg.mxu0
        %vm348 = vcmask 261120
        %v349 = vsel %vm348, %v345, 0.0
        %350 = vadd.xlane.f32.xlu0 %v349
        %v351 = vpop.xlane.xlu0 %350
        %v352 = vrcp.pop 32.0
        %v353 = vmul.f32 %v351, %v352
        %v354 = vsub.f32 %v345, %v353
        %v355 = vmul.f32 %v354, %v354
        %v356 = vsel %vm348, %v355, 0.0
        %357 = vadd.xlane.f32.xlu0 %v356
        %v358 = vpop.xlane.xlu0 %357
        %v359 = vmul.f32 %v358, %v352
        %v360 = vadd.f32 %v359, 1e-12
        %v361 = vrsqrt.pop %v360
        %v362 = vmul.f32 %v354, %v361
        %v363 = vld [vmem:[%s3] sm:$0x1]
        %v365 = vlaneseq
        %v366 = vshrl.u32 %v365, 7
        %v367 = vsub.s32 0, %v366
        %v368 = vrot.slane %v363, %v367
        %v370 = vmul.f32 %v362, %v368
        %v371 = vld [vmem:[%s4] sm:$0x1]
        %v373 = vlaneseq
        %v374 = vshrl.u32 %v373, 7
        %v375 = vsub.s32 0, %v374
        %v376 = vrot.slane %v371, %v375
        %v378 = vadd.f32 %v370, %v376
        %379 = vst.msk [vmem:[%s250] sm:$0xff] %vm348, %v378
        %s380 = sand.u32 %s158, 1
        %s381 = scalar_lea.sflag [#allocation3], %s380
        %s382 = sand.u32 %s158, 1
        %s383 = smul.addr %s382, 8
        %s384 = scalar_lea.vmem [#allocation2], %s383
        // Predicated region
        $region41: #{tpu_custom_call.1} parent=39 // pred_check
          %p385 = pneg %p168
        $region42: #{tpu_custom_call.1} parent=39 // pred_check_branch
          %387 = sbr.rel (%p385) target = $region44
        $region43: #{tpu_custom_call.1} parent=39 // pred_region
          %s389 = ssub.s32 128, 128
          %390 = vsyncadd %s381, %s389
          %s391 = sadd.s32 %s24, %s23
          %s392 = smul.addr %s391, 128
          %s393 = scalar_lea.hbm %s5, %s392
          %s395 = sshll.u32 %s384, 4
          %s396 = int_to_ptr.vmem [resolvable:$true] %s395
          %398 = dma.vmem_to_hbm [thread:$0]  %s396, 128, %s393, %s381
        $region44: #{tpu_custom_call.1} parent=39 // pred_fallthru
          _
      $region40: #{tpu_custom_call.1} parent=5 // pred_fallthru
        _
      %p399 = scmp.le.s32.totalorder 2, %s14
      // Predicated region
      $region45: #{tpu_custom_call.1} parent=5 // pred_check
        %p400 = pneg %p399
      $region46: #{tpu_custom_call.1} parent=5 // pred_check_branch
        %402 = sbr.rel (%p400) target = $region48
      $region47: #{tpu_custom_call.1} parent=5 // pred_region
        %s403 = ssub.s32 %s14, 2
        // Predicated region
        $region49: #{tpu_custom_call.1} parent=47 // pred_check
          %p404 = pneg %p174
        $region50: #{tpu_custom_call.1} parent=47 // pred_check_branch
          %406 = sbr.rel (%p404) target = $region52
        $region51: #{tpu_custom_call.1} parent=47 // pred_region
          %s407 = sand.u32 %s159, 1
          %s408 = scalar_lea.sflag [#allocation3], %s407
          %s409 = sand.u32 %s159, 1
          %s410 = smul.addr %s409, 8
          %s411 = scalar_lea.vmem [#allocation2], %s410
          %412 = dma.done %s408, 128
        $region52: #{tpu_custom_call.1} parent=47 // pred_fallthru
          _
      $region48: #{tpu_custom_call.1} parent=5 // pred_fallthru
        _
    $region6: #{tpu_custom_call.1} parent=1 // loop_footer
      %s18 = sadd.s32 1, %s14
    $region7: #{tpu_custom_call.1} parent=1 // loop_footer_branch
      %13 = sbr.rel target = $region3
    $region8: #{tpu_custom_call.1} parent=1 // loop_exit
      _
    %413 = vsyncpa [#allocation3], 1
    %s414 = scalar_lea.sflag [#allocation3], 1
    %415 = vsyncpa %s414, 1

</llo_original>
